<compile_context>
chip_gen: v7x
topology: tpu7x:2x2x1
jax: 0.10.0
libtpu: 0.0.40
codegen_flags: <defaults>
</compile_context>

<pallas_src>
import math
from functools import partial

import jax
import jax.numpy as jnp
from jax.experimental import pallas as pl
from jax.experimental.pallas import tpu as pltpu


# ----------------------------------------------------------------------------
# Kernels
# ----------------------------------------------------------------------------
def _fa_linear_kernel_single_k(x_ref, wt_ref, b_ref, o_ref):
    """Full-K tile: one MXU matmul + bias add + store per (i, j)."""
    o_ref[...] = (
        jnp.dot(x_ref[...], wt_ref[...], preferred_element_type=jnp.float32)
        + b_ref[...]
    ).astype(o_ref.dtype)


def _fa_linear_kernel_split_k(x_ref, wt_ref, b_ref, o_ref):
    """K-split: accumulate directly into the VMEM-resident f32 output block."""
    k = pl.program_id(2)

    @pl.when(k == 0)
    def _():
        o_ref[...] = jnp.zeros_like(o_ref)

    o_ref[...] += jnp.dot(
        x_ref[...], wt_ref[...], preferred_element_type=jnp.float32
    )

    @pl.when(k == pl.num_programs(2) - 1)
    def _():
        # bias block (1, tn) broadcasts over the tm rows of the output tile.
        o_ref[...] += b_ref[...]


# ----------------------------------------------------------------------------
# Wrapper
# ----------------------------------------------------------------------------
def _round_up(x, m):
    return ((x + m - 1) // m) * m


@partial(jax.jit, static_argnames=("tm_max", "tn_max", "tk_max", "compute_dtype"))
def fa_linear_forward(
    x,
    weight,
    bias,
    *,
    tm_max=256,
    tn_max=512,
    tk_max=512,
    compute_dtype=None,
):
    """output = x @ weight.T + bias via a tiled, pipelined Pallas matmul kernel."""
    M, K = x.shape
    N, K2 = weight.shape
    assert K == K2, "input_features mismatch"
    assert bias.shape == (N,)

    out_dtype = x.dtype

    # Optional reduced-precision operands (MXU-native bf16, f32 accumulate).
    if compute_dtype is not None:
        x = x.astype(compute_dtype)
        weight = weight.astype(compute_dtype)

    # Tile sizes: sublane-aligned M (multiple of 8), lane-aligned N/K (128).
    tm = min(tm_max, _round_up(M, 8))
    tn = min(tn_max, _round_up(N, 128))
    tk = min(tk_max, _round_up(K, 128))
    Mp = _round_up(M, tm)
    Np = _round_up(N, tn)
    Kp = _round_up(K, tk)

    # Zero-pad operands; padded K columns contribute 0 to the accumulation and
    # padded M/N rows/cols are sliced away afterwards.
    xp = x if (Mp == M and Kp == K) else jnp.pad(x, ((0, Mp - M), (0, Kp - K)))
    # One-time transpose to a lane-dense (K, N) RHS layout for the MXU.
    wt = jnp.transpose(weight)
    if Kp != K or Np != N:
        wt = jnp.pad(wt, ((0, Kp - K), (0, Np - N)))
    bp = jnp.pad(bias.astype(jnp.float32), (0, Np - N)).reshape(1, Np)

    gm, gn, gk = Mp // tm, Np // tn, Kp // tk

    if gk == 1:
        kernel = _fa_linear_kernel_single_k
        grid = (gm, gn)
        in_specs = [
            pl.BlockSpec((tm, Kp), lambda i, j: (i, 0)),   # x  (rows, full K)
            pl.BlockSpec((Kp, tn), lambda i, j: (0, j)),   # weight.T (full K, cols)
            pl.BlockSpec((1, tn), lambda i, j: (0, j)),    # bias row
        ]
        out_specs = pl.BlockSpec((tm, tn), lambda i, j: (i, j))
        dim_sem = ("parallel", "parallel")
    else:
        kernel = _fa_linear_kernel_split_k
        grid = (gm, gn, gk)
        in_specs = [
            pl.BlockSpec((tm, tk), lambda i, j, k: (i, k)),  # x block
            pl.BlockSpec((tk, tn), lambda i, j, k: (k, j)),  # weight.T block
            pl.BlockSpec((1, tn), lambda i, j, k: (0, j)),   # bias row
        ]
        out_specs = pl.BlockSpec((tm, tn), lambda i, j, k: (i, j))
        dim_sem = ("parallel", "parallel", "arbitrary")

    out_padded = pl.pallas_call(
        kernel,
        out_shape=jax.ShapeDtypeStruct((Mp, Np), jnp.float32),
        grid_spec=pltpu.PrefetchScalarGridSpec(
            num_scalar_prefetch=0,
            grid=grid,
            in_specs=in_specs,
            out_specs=out_specs,
        ),
        compiler_params=pltpu.CompilerParams(
            dimension_semantics=dim_sem,
            # Explicit budget: safe on v7x (64 MiB physical) and v5e/v6e.
            vmem_limit_bytes=32 * 1024 * 1024,
        ),
    )(xp, wt, bp)

    out = out_padded if (Mp == M and Np == N) else out_padded[:M, :N]
    return out.astype(out_dtype)


# ----------------------------------------------------------------------------
# Parameter init (faithful to FA_linear.__init__)
# ----------------------------------------------------------------------------
def init_fa_linear_params(key, input_features, output_features, fa_rule="FA"):
    """Deterministic re-implementation of FA_linear.__init__ parameter init."""
    k_w, k_fa = jax.random.split(key)

    # torch.nn.init.kaiming_uniform_(weight, a=sqrt(5)) -> bound = 1/sqrt(fan_in)
    bound = 1.0 / math.sqrt(input_features)
    weight = jax.random.uniform(
        k_w, (output_features, input_features), jnp.float32,
        minval=-bound, maxval=bound,
    )
    bias = jnp.zeros((output_features,), jnp.float32)

    # weight_fa is only used in the backward pass; kept for faithfulness.
    if fa_rule == "FA":
        weight_fa = jax.random.uniform(
            k_fa, (output_features, input_features), jnp.float32,
            minval=-bound, maxval=bound,
        )
    elif fa_rule == "FA_Ex-100%":
        weight_fa = jnp.full((output_features, input_features), 0.5, jnp.float32)
    elif fa_rule == "FA_Ex-0%":
        weight_fa = jnp.full((output_features, input_features), -0.5, jnp.float32)
    else:  # 'FA_Ex-80%' / 'FA_Ex-50%' / 'FA_Ex-20%' -> uniform [0, 1)
        weight_fa = jax.random.uniform(
            k_fa, (output_features, input_features), jnp.float32,
            minval=0.0, maxval=1.0,
        )
    return weight, bias, weight_fa


# ----------------------------------------------------------------------------
# Demo / correctness check
# ----------------------------------------------------------------------------
if __name__ == "__main__":
    key = jax.random.PRNGKey(0)
    k_x, k_p, k_x2, k_p2 = jax.random.split(key, 4)

    # --- Test 1: small FA layer (single-K path) -----------------------------
    batch, input_features, output_features = 8, 32, 64
    x = jax.random.normal(k_x, (batch, input_features), jnp.float32)
    weight, bias, _weight_fa = init_fa_linear_params(
        k_p, input_features, output_features, fa_rule="FA"
    )
    out = jax.block_until_ready(fa_linear_forward(x, weight, bias))
    ref = x @ weight.T + bias[None, :]
    assert out.shape == (batch, output_features)
    assert jnp.allclose(out, ref, atol=1e-5, rtol=1e-5)

    # --- Test 2: small layer forcing the K-split accumulation path ----------
    batch2, in2, out2 = 16, 256, 256
    x2 = jax.random.normal(k_x2, (batch2, in2), jnp.float32)
    weight2, bias2, _ = init_fa_linear_params(k_p2, in2, out2, fa_rule="FA")
    y2 = jax.block_until_ready(
        fa_linear_forward(x2, weight2, bias2, tk_max=128)
    )
    ref2 = x2 @ weight2.T + bias2[None, :]
    assert y2.shape == (batch2, out2)
    assert jnp.allclose(y2, ref2, atol=2e-4, rtol=2e-4)

    print("KERNEL_OK")
</pallas_src>

<mosaic_0001>
module attributes {stable_mosaic.version = 11 : i64} {
  func.func @_fa_linear_kernel_single_k(%arg0: i32, %arg1: i32, %arg2: memref<8x128xf32, #tpu.memory_space<vmem>>, %arg3: memref<128x128xf32, #tpu.memory_space<vmem>>, %arg4: memref<1x128xf32, #tpu.memory_space<vmem>>, %arg5: memref<8x128xf32, #tpu.memory_space<vmem>>) attributes {dimension_semantics = [#tpu.dimension_semantics<parallel>, #tpu.dimension_semantics<parallel>], iteration_bounds = array<i64: 1, 1>, scalar_prefetch = 0 : i64, scratch_operands = 0 : i64, tpu.core_type = #tpu.core_type<tc>, window_params = [{transform_indices = @transform_0, window_bounds = array<i64: 8, 128>}, {transform_indices = @transform_1, window_bounds = array<i64: 128, 128>}, {transform_indices = @transform_2, window_bounds = array<i64: 1, 128>}, {transform_indices = @transform_3, window_bounds = array<i64: 8, 128>}]} {
    %c0 = arith.constant 0 : index
    %c0_0 = arith.constant 0 : index
    %0 = vector.load %arg2[%c0, %c0_0] : memref<8x128xf32, #tpu.memory_space<vmem>>, vector<8x128xf32>
    %c0_1 = arith.constant 0 : index
    %c0_2 = arith.constant 0 : index
    %1 = vector.load %arg3[%c0_1, %c0_2] : memref<128x128xf32, #tpu.memory_space<vmem>>, vector<128x128xf32>
    %cst = arith.constant dense<0.000000e+00> : vector<8x128xf32>
    %2 = tpu.matmul %0, %1, %cst {dimension_numbers = #tpu.dot_dimension_numbers<[1], [0], [0], [1], [0, 0, 1, 1], [], []>} : vector<8x128xf32>, vector<128x128xf32>, vector<8x128xf32> -> vector<8x128xf32>
    %c0_3 = arith.constant 0 : index
    %c0_4 = arith.constant 0 : index
    %3 = vector.load %arg4[%c0_3, %c0_4] : memref<1x128xf32, #tpu.memory_space<vmem>>, vector<1x128xf32>
    %4 = vector.broadcast %3 : vector<1x128xf32> to vector<8x128xf32>
    %5 = arith.addf %2, %4 : vector<8x128xf32>
    %c0_5 = arith.constant 0 : index
    %c0_6 = arith.constant 0 : index
    %6 = vector.load %arg5[%c0_5, %c0_6] : memref<8x128xf32, #tpu.memory_space<vmem>>, vector<8x128xf32>
    tpu.vector_store %arg5[%c0_5, %c0_6], %5 {strides = array<i32>} : memref<8x128xf32, #tpu.memory_space<vmem>>, vector<8x128xf32>,
    return
  }
  func.func @transform_0(%arg0: i32, %arg1: i32) -> (i32, i32) {
    %c0_i32 = arith.constant 0 : i32
    %c0_i32_0 = arith.constant 0 : i32
    return %arg0, %c0_i32 : i32, i32
  }
  func.func @transform_1(%arg0: i32, %arg1: i32) -> (i32, i32) {
    %c0_i32 = arith.constant 0 : i32
    %c0_i32_0 = arith.constant 0 : i32
    return %c0_i32, %arg1 : i32, i32
  }
  func.func @transform_2(%arg0: i32, %arg1: i32) -> (i32, i32) {
    %c0_i32 = arith.constant 0 : i32
    %c0_i32_0 = arith.constant 0 : i32
    return %c0_i32, %arg1 : i32, i32
  }
  func.func @transform_3(%arg0: i32, %arg1: i32) -> (i32, i32) {
    %c0_i32 = arith.constant 0 : i32
    return %arg0, %arg1 : i32, i32
  }
}

</mosaic_0001>

<llo_original>
// kernel: fa_linear_forward.1
$region0: #{fa_linear_forward.1}
  #allocation0 [shape = 'u32[]', space=smem, size = 0x4, offset = 0x4, fixed_abs, tag = 'smem constant byte address 0x4 - core index']
  #allocation1 [shape = 'u32[144,128]{1,0:T(1,128)}', space=vmem, size = 0x12000, scoped, tag = 'internal scratch']
  %s0 = inlined_call_operand.vmem [shape: f32[8,128], index: 0, kind: input, shape index: {}]
  %s1 = inlined_call_operand.vmem [shape: f32[128,128], index: 1, kind: input, shape index: {}]
  %s2 = inlined_call_operand.vmem [shape: f32[1,128], index: 2, kind: input, shape index: {}]
  %s3 = inlined_call_operand.hbm [shape: f32[8,128], index: 3, kind: output, shape index: {}]
  %s4 = sld [smem:[#allocation0]]
  $region22: #{fa_linear_forward.1} parent=0
    _
  %s6 = ssub.s32 1, %s4
  %s7 = scalar_select 0, %s6, %s4
  $region1: #{fa_linear_forward.1} parent=0
    #allocation2 [shape = 'u8[4096]{0}', space=vmem, size = 0x1000, scoped, tag = 'output window, operand 0, single buffered']
    #allocation3 [shape = 's32[1]{0}', space=sflag, size = 0x4, scoped, tag = 'scoped memory for fa_linear_forward.1']
    %8 = vsyncpa [#allocation3], 0
    // Predicated region
    $region2: #{fa_linear_forward.1} parent=1 // pred_check
      _
    $region3: #{fa_linear_forward.1} parent=1 // pred_check_branch
      %10 = sbr.rel (0) target = $region5
    $region4: #{fa_linear_forward.1} parent=1 // pred_region
      _
    $region5: #{fa_linear_forward.1} parent=1 // pred_fallthru
      _
    // Predicated region
    $region6: #{fa_linear_forward.1} parent=1 // pred_check
      _
    $region7: #{fa_linear_forward.1} parent=1 // pred_check_branch
      %12 = sbr.rel (0) target = $region9
    $region8: #{fa_linear_forward.1} parent=1 // pred_region
      _
    $region9: #{fa_linear_forward.1} parent=1 // pred_fallthru
      _
    // Predicated region
    $region10: #{fa_linear_forward.1} parent=1 // pred_check
      _
    $region11: #{fa_linear_forward.1} parent=1 // pred_check_branch
      %14 = sbr.rel (0) target = $region13
    $region12: #{fa_linear_forward.1} parent=1 // pred_region
      _
    $region13: #{fa_linear_forward.1} parent=1 // pred_fallthru
      _
    %v15 = vld [vmem:[%s0] sm:$0xff]
    %v16 = vld [vmem:[%s1] sm:$0xff]
    %v17 = vld [vmem:[%s1 + $0x8] sm:$0xff]
    %v18 = vld [vmem:[%s1 + $0x10] sm:$0xff]
    %v19 = vld [vmem:[%s1 + $0x18] sm:$0xff]
    %v20 = vld [vmem:[%s1 + $0x20] sm:$0xff]
    %v21 = vld [vmem:[%s1 + $0x28] sm:$0xff]
    %v22 = vld [vmem:[%s1 + $0x30] sm:$0xff]
    %v23 = vld [vmem:[%s1 + $0x38] sm:$0xff]
    %v24 = vld [vmem:[%s1 + $0x40] sm:$0xff]
    %v25 = vld [vmem:[%s1 + $0x48] sm:$0xff]
    %v26 = vld [vmem:[%s1 + $0x50] sm:$0xff]
    %v27 = vld [vmem:[%s1 + $0x58] sm:$0xff]
    %v28 = vld [vmem:[%s1 + $0x60] sm:$0xff]
    %v29 = vld [vmem:[%s1 + $0x68] sm:$0xff]
    %v30 = vld [vmem:[%s1 + $0x70] sm:$0xff]
    %v31 = vld [vmem:[%s1 + $0x78] sm:$0xff]
    %v32 = vld [vmem:[%s2] sm:$0x1]
    %v34 = vlaneseq
    %v35 = vshrl.u32 %v34, 7
    %v36 = vsub.s32 0, %v35
    %v37 = vrot.slane %v32, %v36
    %39 = vmatprep.subr.mxu0 0.0
    %40 = vmatpush1.msra.mxu0 %v16
    %41 = vmatprep.subr.mxu0 0.0
    %42 = vmatpush1.msra.mxu0 %v17
    %43 = vmatprep.subr.mxu0 0.0
    %44 = vmatpush1.msra.mxu0 %v18
    %45 = vmatprep.subr.mxu0 0.0
    %46 = vmatpush1.msra.mxu0 %v19
    %47 = vmatprep.subr.mxu0 0.0
    %48 = vmatpush1.msra.mxu0 %v20
    %49 = vmatprep.subr.mxu0 0.0
    %50 = vmatpush1.msra.mxu0 %v21
    %51 = vmatprep.subr.mxu0 0.0
    %52 = vmatpush1.msra.mxu0 %v22
    %53 = vmatprep.subr.mxu0 0.0
    %54 = vmatpush1.msra.mxu0 %v23
    %55 = vmatprep.subr.mxu0 0.0
    %56 = vmatpush1.msra.mxu0 %v24
    %57 = vmatprep.subr.mxu0 0.0
    %58 = vmatpush1.msra.mxu0 %v25
    %59 = vmatprep.subr.mxu0 0.0
    %60 = vmatpush1.msra.mxu0 %v26
    %61 = vmatprep.subr.mxu0 0.0
    %62 = vmatpush1.msra.mxu0 %v27
    %63 = vmatprep.subr.mxu0 0.0
    %64 = vmatpush1.msra.mxu0 %v28
    %65 = vmatprep.subr.mxu0 0.0
    %66 = vmatpush1.msra.mxu0 %v29
    %67 = vmatprep.subr.mxu0 0.0
    %68 = vmatpush1.msra.mxu0 %v30
    %69 = vmatprep.subr.mxu0 0.0
    %70 = vmatpush1.msra.mxu0 %v31
    %71 = vmatprep.subr.mxu0 0.0
    %72 = vmatpush1.msra.mxu0 0.0
    %73 = vmatprep.subr.mxu0 0.0
    %74 = vmatpush1.msra.mxu0 0.0
    %75 = vmatprep.subr.mxu0 0.0
    %76 = vmatpush1.msra.mxu0 0.0
    %77 = vmatprep.subr.mxu0 0.0
    %78 = vmatpush1.msra.mxu0 0.0
    %79 = vmatprep.subr.mxu0 0.0
    %80 = vmatpush1.msra.mxu0 0.0
    %81 = vmatprep.subr.mxu0 0.0
    %82 = vmatpush1.msra.mxu0 0.0
    %83 = vmatprep.subr.mxu0 0.0
    %84 = vmatpush1.msra.mxu0 0.0
    %85 = vmatprep.subr.mxu0 0.0
    %86 = vmatpush1.msra.mxu0 0.0
    %87 = vmatprep.subr.mxu0 0.0
    %88 = vmatpush1.msra.mxu0 0.0
    %89 = vmatprep.subr.mxu0 0.0
    %90 = vmatpush1.msra.mxu0 0.0
    %91 = vmatprep.subr.mxu0 0.0
    %92 = vmatpush1.msra.mxu0 0.0
    %93 = vmatprep.subr.mxu0 0.0
    %94 = vmatpush1.msra.mxu0 0.0
    %95 = vmatprep.subr.mxu0 0.0
    %96 = vmatpush1.msra.mxu0 0.0
    %97 = vmatprep.subr.mxu0 0.0
    %98 = vmatpush1.msra.mxu0 0.0
    %99 = vmatprep.subr.mxu0 0.0
    %100 = vmatpush1.msra.mxu0 0.0
    %101 = vmatprep.subr.mxu0 0.0
    %102 = vmatpush1.msra.mxu0 0.0
    %103 = vmatprep.mubr.f32.mxu0 0.0
    %104 = vmatmul.mubr.f32.gmra.mrb[0].mxu0 %v15
    %v105 = vpop.f32.mrb[0].mxu0
    %v106 = vadd.f32 %v37, %v105
    %v107 = vpop.f32.mrb[0].mxu0
    %108 = vdwg.mxu0
    %109 = vst [vmem:[#allocation2] sm:$0xff] %v106
    // Predicated region
    $region14: #{fa_linear_forward.1} parent=1 // pred_check
      _
    $region15: #{fa_linear_forward.1} parent=1 // pred_check_branch
      %111 = sbr.rel (0) target = $region17
    $region16: #{fa_linear_forward.1} parent=1 // pred_region
      %s113 = ssub.s32 128, 128
      %114 = vsyncadd [#allocation3], %s113
      %s116 = sshll.u32 [#allocation2], 4
      %s117 = int_to_ptr.vmem [resolvable:$true] %s116
      %119 = dma.vmem_to_hbm [thread:$0]  %s117, 128, %s3, [#allocation3]
    $region17: #{fa_linear_forward.1} parent=1 // pred_fallthru
      _
    // Predicated region
    $region18: #{fa_linear_forward.1} parent=1 // pred_check
      _
    $region19: #{fa_linear_forward.1} parent=1 // pred_check_branch
      %121 = sbr.rel (0) target = $region21
    $region20: #{fa_linear_forward.1} parent=1 // pred_region
      %122 = dma.done [#allocation3], 128
    $region21: #{fa_linear_forward.1} parent=1 // pred_fallthru
      _
    %123 = vsyncpa [#allocation3], 1

</llo_original>
